<compile_context>
chip_gen: v7x
topology: tpu7x:2x2x1
jax: 0.10.0
libtpu: 0.0.40
codegen_flags: <defaults>
</compile_context>

<pallas_src>
import jax
import jax.numpy as jnp
from jax.experimental import pallas as pl
from jax.experimental.pallas import tpu as pltpu

HUNITS = [1, 10, 5, 1]     # default BNN hunits (kernel assumes d0 == 1 and d3 == 1)
LANES = 128                # TPU lane width: one sample per lane
TILE_ROWS = 16             # sublane rows per batch tile -> 16*128 = 2048 samples/step


# ------------------------------- kernel -------------------------------------
def _make_kernel(d1, d2):
    """Build the fused 3-layer MLP kernel for hidden widths (d1, d2)."""
    w1_off = 0
    b1_off = d1
    w2_off = 2 * d1
    b2_off = 2 * d1 + d1 * d2
    w3_off = b2_off + d2

    def kernel(params_ref, x_ref, o_ref):
        s = pl.program_id(1)                      # weight-sample index (inner grid axis)
        x = x_ref[...]                            # (TILE_ROWS, 128): one input scalar per lane

        def p(idx):                               # scalar weight/bias from SMEM
            return params_ref[s, idx]

        # Layer 1 (VPU "outer product": d0 == 1) fused with the layer-2
        # accumulation so only one hidden-1 plane is live at a time.
        h2 = [None] * d2
        for j in range(d1):
            h1_j = jnp.maximum(x * p(w1_off + j) + p(b1_off + j), 0.0)   # ReLU
            for k in range(d2):
                t = h1_j * p(w2_off + j * d2 + k)
                h2[k] = t if h2[k] is None else h2[k] + t

        # Layer-2 bias + ReLU, then the final bias-free layer (Identity activation).
        y = None
        for k in range(d2):
            a_k = jnp.maximum(h2[k] + p(b2_off + k), 0.0)
            t = a_k * p(w3_off + k)
            y = t if y is None else y + t

        o_ref[0] = y                              # lane-dense (TILE_ROWS, 128) write

    return kernel


# ------------------------------- wrappers ------------------------------------
def pack_params(w1, b1, w2, b2, w3):
    """Pack one weight sample into a flat f32 vector (layout matches the kernel)."""
    assert w1.shape[0] == 1 and w3.shape[1] == 1, "kernel assumes scalar input/output"
    return jnp.concatenate([jnp.ravel(w1), jnp.ravel(b1), jnp.ravel(w2),
                            jnp.ravel(b2), jnp.ravel(w3)]).astype(jnp.float32)


def bnn_forward_samples(x, packed_params, hunits=tuple(HUNITS), tile_rows=TILE_ROWS):
    """Evaluate the BNN forward pass for S weight samples in one pallas_call.

    x:             (N,) or (N, 1) float32 inputs.
    packed_params: (S, P) float32, each row produced by pack_params().
    returns:       (S, N, 1) float32.
    """
    d0, d1, d2, d3 = hunits
    assert d0 == 1 and d3 == 1     # TODO(synk): general d0 > 1 would need a feature axis.
    p_len = d1 + d1 + d1 * d2 + d2 + d2

    packed_params = jnp.asarray(packed_params, jnp.float32)
    s_count, p_count = packed_params.shape
    assert p_count == p_len

    x = jnp.asarray(x, jnp.float32)
    if x.ndim == 2:
        assert x.shape[1] == 1
        x = x[:, 0]
    n = x.shape[0]

    # Lane-dense layout: one sample per (sublane, lane) element of the slab.
    rows = -(-n // LANES)
    tr = max(8, min(tile_rows, ((rows + 7) // 8) * 8))    # shrink tile for tiny batches
    rows_pad = -(-rows // tr) * tr
    n_pad = rows_pad * LANES
    x_slab = jnp.pad(x, (0, n_pad - n)).reshape(rows_pad, LANES)
    num_tiles = rows_pad // tr

    out = pl.pallas_call(
        _make_kernel(d1, d2),
        out_shape=jax.ShapeDtypeStruct((s_count, rows_pad, LANES), jnp.float32),
        grid=(num_tiles, s_count),       # samples innermost -> x tile reused across samples
        in_specs=[
            pl.BlockSpec(memory_space=pltpu.MemorySpace.SMEM),     # packed weights (resident)
            pl.BlockSpec((tr, LANES), lambda i, s: (i, 0)),        # lane-dense x tile
        ],
        out_specs=pl.BlockSpec((1, tr, LANES), lambda i, s: (s, i, 0)),
        compiler_params=pltpu.CompilerParams(
            dimension_semantics=("parallel", "parallel")),
    )(packed_params, x_slab)

    return out.reshape(s_count, n_pad)[:, :n, None]


def bnn_forward(x, w1, b1, w2, b2, w3, tile_rows=TILE_ROWS):
    """Single-weight-sample forward matching the PyTorch module's forward()."""
    hunits = (w1.shape[0], w1.shape[1], w2.shape[1], w3.shape[1])
    packed = pack_params(w1, b1, w2, b2, w3)[None, :]
    return bnn_forward_samples(x, packed, hunits=hunits, tile_rows=tile_rows)[0]


# --------------------------- parameter init / ref ----------------------------
def init_params(key, hunits):
    """Deterministic synthetic init (BNN samples weights from its prior; we draw N(0,1))."""
    d0, d1, d2, d3 = hunits
    k1, k2, k3, k4, k5 = jax.random.split(key, 5)
    w1 = jax.random.normal(k1, (d0, d1), jnp.float32)
    b1 = jax.random.normal(k2, (d1,), jnp.float32)
    w2 = jax.random.normal(k3, (d1, d2), jnp.float32)
    b2 = jax.random.normal(k4, (d2,), jnp.float32)
    w3 = jax.random.normal(k5, (d2, d3), jnp.float32)   # final layer: bias=False
    return w1, b1, w2, b2, w3


def reference_forward(x, w1, b1, w2, b2, w3):
    h1 = jax.nn.relu(x @ w1 + b1)
    h2 = jax.nn.relu(h1 @ w2 + b2)
    return h2 @ w3


if __name__ == "__main__":
    key = jax.random.PRNGKey(0)
    kx, kp = jax.random.split(key)

    N, S = 5000, 3                                   # 3 posterior weight samples
    x = jax.random.normal(kx, (N, HUNITS[0]), jnp.float32)
    param_sets = [init_params(k, HUNITS) for k in jax.random.split(kp, S)]
    stacked = jnp.stack([pack_params(*ps) for ps in param_sets])      # (S, 80)

    # Multi-sample path (grid = (batch_tiles, samples)).
    y = bnn_forward_samples(x, stacked, hunits=tuple(HUNITS))
    y = jax.block_until_ready(y)
    assert y.shape == (S, N, HUNITS[-1])

    ok = True
    for si, ps in enumerate(param_sets):
        y_ref = reference_forward(x, *ps)
        ok &= bool(jnp.allclose(y[si], y_ref, atol=1e-4, rtol=1e-5))

    # Single-sample path matching the PyTorch module signature.
    y0 = jax.block_until_ready(bnn_forward(x, *param_sets[0]))
    assert y0.shape == (N, HUNITS[-1])
    ok &= bool(jnp.allclose(y0, reference_forward(x, *param_sets[0]), atol=1e-4, rtol=1e-5))

    assert ok
    # TODO(synk): heteroscedastic sigma sampling, prior_log_prob and reset_parameters
    # are training-time torch.distributions machinery, not part of the forward hot path.
    print("KERNEL_OK")
</pallas_src>

<mosaic_0001>
module attributes {stable_mosaic.version = 11 : i64} {
  func.func @kernel(%arg0: i32, %arg1: i32, %arg2: memref<3x80xf32, #tpu.memory_space<smem>>, %arg3: memref<16x128xf32, #tpu.memory_space<vmem>>, %arg4: memref<1x16x128xf32, #tpu.memory_space<vmem>>) attributes {dimension_semantics = [#tpu.dimension_semantics<parallel>, #tpu.dimension_semantics<parallel>], iteration_bounds = array<i64: 3, 3>, scalar_prefetch = 0 : i64, scratch_operands = 0 : i64, tpu.core_type = #tpu.core_type<tc>, window_params = [{transform_indices = @transform_0, window_bounds = array<i64: 3, 80>}, {transform_indices = @transform_1, window_bounds = array<i64: 16, 128>}, {transform_indices = @transform_2, window_bounds = array<i64: 1, 16, 128>}]} {
    %c0 = arith.constant 0 : index
    %c0_0 = arith.constant 0 : index
    %0 = vector.load %arg3[%c0, %c0_0] : memref<16x128xf32, #tpu.memory_space<vmem>>, vector<16x128xf32>
    %1 = arith.index_cast %arg1 : i32 to index
    %c0_1 = arith.constant 0 : index
    %2 = memref.load %arg2[%1, %c0_1] : memref<3x80xf32, #tpu.memory_space<smem>>
    %3 = vector.broadcast %2 : f32 to vector<16x128xf32>
    %4 = arith.mulf %0, %3 : vector<16x128xf32>
    %5 = arith.index_cast %arg1 : i32 to index
    %c10 = arith.constant 10 : index
    %6 = memref.load %arg2[%5, %c10] : memref<3x80xf32, #tpu.memory_space<smem>>
    %7 = vector.broadcast %6 : f32 to vector<16x128xf32>
    %8 = arith.addf %4, %7 : vector<16x128xf32>
    %cst = arith.constant 0.000000e+00 : f32
    %9 = vector.broadcast %cst : f32 to vector<16x128xf32>
    %10 = arith.maximumf %8, %9 : vector<16x128xf32>
    %11 = arith.index_cast %arg1 : i32 to index
    %c20 = arith.constant 20 : index
    %12 = memref.load %arg2[%11, %c20] : memref<3x80xf32, #tpu.memory_space<smem>>
    %13 = vector.broadcast %12 : f32 to vector<16x128xf32>
    %14 = arith.mulf %10, %13 : vector<16x128xf32>
    %15 = arith.index_cast %arg1 : i32 to index
    %c21 = arith.constant 21 : index
    %16 = memref.load %arg2[%15, %c21] : memref<3x80xf32, #tpu.memory_space<smem>>
    %17 = vector.broadcast %16 : f32 to vector<16x128xf32>
    %18 = arith.mulf %10, %17 : vector<16x128xf32>
    %19 = arith.index_cast %arg1 : i32 to index
    %c22 = arith.constant 22 : index
    %20 = memref.load %arg2[%19, %c22] : memref<3x80xf32, #tpu.memory_space<smem>>
    %21 = vector.broadcast %20 : f32 to vector<16x128xf32>
    %22 = arith.mulf %10, %21 : vector<16x128xf32>
    %23 = arith.index_cast %arg1 : i32 to index
    %c23 = arith.constant 23 : index
    %24 = memref.load %arg2[%23, %c23] : memref<3x80xf32, #tpu.memory_space<smem>>
    %25 = vector.broadcast %24 : f32 to vector<16x128xf32>
    %26 = arith.mulf %10, %25 : vector<16x128xf32>
    %27 = arith.index_cast %arg1 : i32 to index
    %c24 = arith.constant 24 : index
    %28 = memref.load %arg2[%27, %c24] : memref<3x80xf32, #tpu.memory_space<smem>>
    %29 = vector.broadcast %28 : f32 to vector<16x128xf32>
    %30 = arith.mulf %10, %29 : vector<16x128xf32>
    %31 = arith.index_cast %arg1 : i32 to index
    %c1 = arith.constant 1 : index
    %32 = memref.load %arg2[%31, %c1] : memref<3x80xf32, #tpu.memory_space<smem>>
    %33 = vector.broadcast %32 : f32 to vector<16x128xf32>
    %34 = arith.mulf %0, %33 : vector<16x128xf32>
    %35 = arith.index_cast %arg1 : i32 to index
    %c11 = arith.constant 11 : index
    %36 = memref.load %arg2[%35, %c11] : memref<3x80xf32, #tpu.memory_space<smem>>
    %37 = vector.broadcast %36 : f32 to vector<16x128xf32>
    %38 = arith.addf %34, %37 : vector<16x128xf32>
    %cst_2 = arith.constant 0.000000e+00 : f32
    %39 = vector.broadcast %cst_2 : f32 to vector<16x128xf32>
    %40 = arith.maximumf %38, %39 : vector<16x128xf32>
    %41 = arith.index_cast %arg1 : i32 to index
    %c25 = arith.constant 25 : index
    %42 = memref.load %arg2[%41, %c25] : memref<3x80xf32, #tpu.memory_space<smem>>
    %43 = vector.broadcast %42 : f32 to vector<16x128xf32>
    %44 = arith.mulf %40, %43 : vector<16x128xf32>
    %45 = arith.addf %14, %44 : vector<16x128xf32>
    %46 = arith.index_cast %arg1 : i32 to index
    %c26 = arith.constant 26 : index
    %47 = memref.load %arg2[%46, %c26] : memref<3x80xf32, #tpu.memory_space<smem>>
    %48 = vector.broadcast %47 : f32 to vector<16x128xf32>
    %49 = arith.mulf %40, %48 : vector<16x128xf32>
    %50 = arith.addf %18, %49 : vector<16x128xf32>
    %51 = arith.index_cast %arg1 : i32 to index
    %c27 = arith.constant 27 : index
    %52 = memref.load %arg2[%51, %c27] : memref<3x80xf32, #tpu.memory_space<smem>>
    %53 = vector.broadcast %52 : f32 to vector<16x128xf32>
    %54 = arith.mulf %40, %53 : vector<16x128xf32>
    %55 = arith.addf %22, %54 : vector<16x128xf32>
    %56 = arith.index_cast %arg1 : i32 to index
    %c28 = arith.constant 28 : index
    %57 = memref.load %arg2[%56, %c28] : memref<3x80xf32, #tpu.memory_space<smem>>
    %58 = vector.broadcast %57 : f32 to vector<16x128xf32>
    %59 = arith.mulf %40, %58 : vector<16x128xf32>
    %60 = arith.addf %26, %59 : vector<16x128xf32>
    %61 = arith.index_cast %arg1 : i32 to index
    %c29 = arith.constant 29 : index
    %62 = memref.load %arg2[%61, %c29] : memref<3x80xf32, #tpu.memory_space<smem>>
    %63 = vector.broadcast %62 : f32 to vector<16x128xf32>
    %64 = arith.mulf %40, %63 : vector<16x128xf32>
    %65 = arith.addf %30, %64 : vector<16x128xf32>
    %66 = arith.index_cast %arg1 : i32 to index
    %c2 = arith.constant 2 : index
    %67 = memref.load %arg2[%66, %c2] : memref<3x80xf32, #tpu.memory_space<smem>>
    %68 = vector.broadcast %67 : f32 to vector<16x128xf32>
    %69 = arith.mulf %0, %68 : vector<16x128xf32>
    %70 = arith.index_cast %arg1 : i32 to index
    %c12 = arith.constant 12 : index
    %71 = memref.load %arg2[%70, %c12] : memref<3x80xf32, #tpu.memory_space<smem>>
    %72 = vector.broadcast %71 : f32 to vector<16x128xf32>
    %73 = arith.addf %69, %72 : vector<16x128xf32>
    %cst_3 = arith.constant 0.000000e+00 : f32
    %74 = vector.broadcast %cst_3 : f32 to vector<16x128xf32>
    %75 = arith.maximumf %73, %74 : vector<16x128xf32>
    %76 = arith.index_cast %arg1 : i32 to index
    %c30 = arith.constant 30 : index
    %77 = memref.load %arg2[%76, %c30] : memref<3x80xf32, #tpu.memory_space<smem>>
    %78 = vector.broadcast %77 : f32 to vector<16x128xf32>
    %79 = arith.mulf %75, %78 : vector<16x128xf32>
    %80 = arith.addf %45, %79 : vector<16x128xf32>
    %81 = arith.index_cast %arg1 : i32 to index
    %c31 = arith.constant 31 : index
    %82 = memref.load %arg2[%81, %c31] : memref<3x80xf32, #tpu.memory_space<smem>>
    %83 = vector.broadcast %82 : f32 to vector<16x128xf32>
    %84 = arith.mulf %75, %83 : vector<16x128xf32>
    %85 = arith.addf %50, %84 : vector<16x128xf32>
    %86 = arith.index_cast %arg1 : i32 to index
    %c32 = arith.constant 32 : index
    %87 = memref.load %arg2[%86, %c32] : memref<3x80xf32, #tpu.memory_space<smem>>
    %88 = vector.broadcast %87 : f32 to vector<16x128xf32>
    %89 = arith.mulf %75, %88 : vector<16x128xf32>
    %90 = arith.addf %55, %89 : vector<16x128xf32>
    %91 = arith.index_cast %arg1 : i32 to index
    %c33 = arith.constant 33 : index
    %92 = memref.load %arg2[%91, %c33] : memref<3x80xf32, #tpu.memory_space<smem>>
    %93 = vector.broadcast %92 : f32 to vector<16x128xf32>
    %94 = arith.mulf %75, %93 : vector<16x128xf32>
    %95 = arith.addf %60, %94 : vector<16x128xf32>
    %96 = arith.index_cast %arg1 : i32 to index
    %c34 = arith.constant 34 : index
    %97 = memref.load %arg2[%96, %c34] : memref<3x80xf32, #tpu.memory_space<smem>>
    %98 = vector.broadcast %97 : f32 to vector<16x128xf32>
    %99 = arith.mulf %75, %98 : vector<16x128xf32>
    %100 = arith.addf %65, %99 : vector<16x128xf32>
    %101 = arith.index_cast %arg1 : i32 to index
    %c3 = arith.constant 3 : index
    %102 = memref.load %arg2[%101, %c3] : memref<3x80xf32, #tpu.memory_space<smem>>
    %103 = vector.broadcast %102 : f32 to vector<16x128xf32>
    %104 = arith.mulf %0, %103 : vector<16x128xf32>
    %105 = arith.index_cast %arg1 : i32 to index
    %c13 = arith.constant 13 : index
    %106 = memref.load %arg2[%105, %c13] : memref<3x80xf32, #tpu.memory_space<smem>>
    %107 = vector.broadcast %106 : f32 to vector<16x128xf32>
    %108 = arith.addf %104, %107 : vector<16x128xf32>
    %cst_4 = arith.constant 0.000000e+00 : f32
    %109 = vector.broadcast %cst_4 : f32 to vector<16x128xf32>
    %110 = arith.maximumf %108, %109 : vector<16x128xf32>
    %111 = arith.index_cast %arg1 : i32 to index
    %c35 = arith.constant 35 : index
    %112 = memref.load %arg2[%111, %c35] : memref<3x80xf32, #tpu.memory_space<smem>>
    %113 = vector.broadcast %112 : f32 to vector<16x128xf32>
    %114 = arith.mulf %110, %113 : vector<16x128xf32>
    %115 = arith.addf %80, %114 : vector<16x128xf32>
    %116 = arith.index_cast %arg1 : i32 to index
    %c36 = arith.constant 36 : index
    %117 = memref.load %arg2[%116, %c36] : memref<3x80xf32, #tpu.memory_space<smem>>
    %118 = vector.broadcast %117 : f32 to vector<16x128xf32>
    %119 = arith.mulf %110, %118 : vector<16x128xf32>
    %120 = arith.addf %85, %119 : vector<16x128xf32>
    %121 = arith.index_cast %arg1 : i32 to index
    %c37 = arith.constant 37 : index
    %122 = memref.load %arg2[%121, %c37] : memref<3x80xf32, #tpu.memory_space<smem>>
    %123 = vector.broadcast %122 : f32 to vector<16x128xf32>
    %124 = arith.mulf %110, %123 : vector<16x128xf32>
    %125 = arith.addf %90, %124 : vector<16x128xf32>
    %126 = arith.index_cast %arg1 : i32 to index
    %c38 = arith.constant 38 : index
    %127 = memref.load %arg2[%126, %c38] : memref<3x80xf32, #tpu.memory_space<smem>>
    %128 = vector.broadcast %127 : f32 to vector<16x128xf32>
    %129 = arith.mulf %110, %128 : vector<16x128xf32>
    %130 = arith.addf %95, %129 : vector<16x128xf32>
    %131 = arith.index_cast %arg1 : i32 to index
    %c39 = arith.constant 39 : index
    %132 = memref.load %arg2[%131, %c39] : memref<3x80xf32, #tpu.memory_space<smem>>
    %133 = vector.broadcast %132 : f32 to vector<16x128xf32>
    %134 = arith.mulf %110, %133 : vector<16x128xf32>
    %135 = arith.addf %100, %134 : vector<16x128xf32>
    %136 = arith.index_cast %arg1 : i32 to index
    %c4 = arith.constant 4 : index
    %137 = memref.load %arg2[%136, %c4] : memref<3x80xf32, #tpu.memory_space<smem>>
    %138 = vector.broadcast %137 : f32 to vector<16x128xf32>
    %139 = arith.mulf %0, %138 : vector<16x128xf32>
    %140 = arith.index_cast %arg1 : i32 to index
    %c14 = arith.constant 14 : index
    %141 = memref.load %arg2[%140, %c14] : memref<3x80xf32, #tpu.memory_space<smem>>
    %142 = vector.broadcast %141 : f32 to vector<16x128xf32>
    %143 = arith.addf %139, %142 : vector<16x128xf32>
    %cst_5 = arith.constant 0.000000e+00 : f32
    %144 = vector.broadcast %cst_5 : f32 to vector<16x128xf32>
    %145 = arith.maximumf %143, %144 : vector<16x128xf32>
    %146 = arith.index_cast %arg1 : i32 to index
    %c40 = arith.constant 40 : index
    %147 = memref.load %arg2[%146, %c40] : memref<3x80xf32, #tpu.memory_space<smem>>
    %148 = vector.broadcast %147 : f32 to vector<16x128xf32>
    %149 = arith.mulf %145, %148 : vector<16x128xf32>
    %150 = arith.addf %115, %149 : vector<16x128xf32>
    %151 = arith.index_cast %arg1 : i32 to index
    %c41 = arith.constant 41 : index
    %152 = memref.load %arg2[%151, %c41] : memref<3x80xf32, #tpu.memory_space<smem>>
    %153 = vector.broadcast %152 : f32 to vector<16x128xf32>
    %154 = arith.mulf %145, %153 : vector<16x128xf32>
    %155 = arith.addf %120, %154 : vector<16x128xf32>
    %156 = arith.index_cast %arg1 : i32 to index
    %c42 = arith.constant 42 : index
    %157 = memref.load %arg2[%156, %c42] : memref<3x80xf32, #tpu.memory_space<smem>>
    %158 = vector.broadcast %157 : f32 to vector<16x128xf32>
    %159 = arith.mulf %145, %158 : vector<16x128xf32>
    %160 = arith.addf %125, %159 : vector<16x128xf32>
    %161 = arith.index_cast %arg1 : i32 to index
    %c43 = arith.constant 43 : index
    %162 = memref.load %arg2[%161, %c43] : memref<3x80xf32, #tpu.memory_space<smem>>
    %163 = vector.broadcast %162 : f32 to vector<16x128xf32>
    %164 = arith.mulf %145, %163 : vector<16x128xf32>
    %165 = arith.addf %130, %164 : vector<16x128xf32>
    %166 = arith.index_cast %arg1 : i32 to index
    %c44 = arith.constant 44 : index
    %167 = memref.load %arg2[%166, %c44] : memref<3x80xf32, #tpu.memory_space<smem>>
    %168 = vector.broadcast %167 : f32 to vector<16x128xf32>
    %169 = arith.mulf %145, %168 : vector<16x128xf32>
    %170 = arith.addf %135, %169 : vector<16x128xf32>
    %171 = arith.index_cast %arg1 : i32 to index
    %c5 = arith.constant 5 : index
    %172 = memref.load %arg2[%171, %c5] : memref<3x80xf32, #tpu.memory_space<smem>>
    %173 = vector.broadcast %172 : f32 to vector<16x128xf32>
    %174 = arith.mulf %0, %173 : vector<16x128xf32>
    %175 = arith.index_cast %arg1 : i32 to index
    %c15 = arith.constant 15 : index
    %176 = memref.load %arg2[%175, %c15] : memref<3x80xf32, #tpu.memory_space<smem>>
    %177 = vector.broadcast %176 : f32 to vector<16x128xf32>
    %178 = arith.addf %174, %177 : vector<16x128xf32>
    %cst_6 = arith.constant 0.000000e+00 : f32
    %179 = vector.broadcast %cst_6 : f32 to vector<16x128xf32>
    %180 = arith.maximumf %178, %179 : vector<16x128xf32>
    %181 = arith.index_cast %arg1 : i32 to index
    %c45 = arith.constant 45 : index
    %182 = memref.load %arg2[%181, %c45] : memref<3x80xf32, #tpu.memory_space<smem>>
    %183 = vector.broadcast %182 : f32 to vector<16x128xf32>
    %184 = arith.mulf %180, %183 : vector<16x128xf32>
    %185 = arith.addf %150, %184 : vector<16x128xf32>
    %186 = arith.index_cast %arg1 : i32 to index
    %c46 = arith.constant 46 : index
    %187 = memref.load %arg2[%186, %c46] : memref<3x80xf32, #tpu.memory_space<smem>>
    %188 = vector.broadcast %187 : f32 to vector<16x128xf32>
    %189 = arith.mulf %180, %188 : vector<16x128xf32>
    %190 = arith.addf %155, %189 : vector<16x128xf32>
    %191 = arith.index_cast %arg1 : i32 to index
    %c47 = arith.constant 47 : index
    %192 = memref.load %arg2[%191, %c47] : memref<3x80xf32, #tpu.memory_space<smem>>
    %193 = vector.broadcast %192 : f32 to vector<16x128xf32>
    %194 = arith.mulf %180, %193 : vector<16x128xf32>
    %195 = arith.addf %160, %194 : vector<16x128xf32>
    %196 = arith.index_cast %arg1 : i32 to index
    %c48 = arith.constant 48 : index
    %197 = memref.load %arg2[%196, %c48] : memref<3x80xf32, #tpu.memory_space<smem>>
    %198 = vector.broadcast %197 : f32 to vector<16x128xf32>
    %199 = arith.mulf %180, %198 : vector<16x128xf32>
    %200 = arith.addf %165, %199 : vector<16x128xf32>
    %201 = arith.index_cast %arg1 : i32 to index
    %c49 = arith.constant 49 : index
    %202 = memref.load %arg2[%201, %c49] : memref<3x80xf32, #tpu.memory_space<smem>>
    %203 = vector.broadcast %202 : f32 to vector<16x128xf32>
    %204 = arith.mulf %180, %203 : vector<16x128xf32>
    %205 = arith.addf %170, %204 : vector<16x128xf32>
    %206 = arith.index_cast %arg1 : i32 to index
    %c6 = arith.constant 6 : index
    %207 = memref.load %arg2[%206, %c6] : memref<3x80xf32, #tpu.memory_space<smem>>
    %208 = vector.broadcast %207 : f32 to vector<16x128xf32>
    %209 = arith.mulf %0, %208 : vector<16x128xf32>
    %210 = arith.index_cast %arg1 : i32 to index
    %c16 = arith.constant 16 : index
    %211 = memref.load %arg2[%210, %c16] : memref<3x80xf32, #tpu.memory_space<smem>>
    %212 = vector.broadcast %211 : f32 to vector<16x128xf32>
    %213 = arith.addf %209, %212 : vector<16x128xf32>
    %cst_7 = arith.constant 0.000000e+00 : f32
    %214 = vector.broadcast %cst_7 : f32 to vector<16x128xf32>
    %215 = arith.maximumf %213, %214 : vector<16x128xf32>
    %216 = arith.index_cast %arg1 : i32 to index
    %c50 = arith.constant 50 : index
    %217 = memref.load %arg2[%216, %c50] : memref<3x80xf32, #tpu.memory_space<smem>>
    %218 = vector.broadcast %217 : f32 to vector<16x128xf32>
    %219 = arith.mulf %215, %218 : vector<16x128xf32>
    %220 = arith.addf %185, %219 : vector<16x128xf32>
    %221 = arith.index_cast %arg1 : i32 to index
    %c51 = arith.constant 51 : index
    %222 = memref.load %arg2[%221, %c51] : memref<3x80xf32, #tpu.memory_space<smem>>
    %223 = vector.broadcast %222 : f32 to vector<16x128xf32>
    %224 = arith.mulf %215, %223 : vector<16x128xf32>
    %225 = arith.addf %190, %224 : vector<16x128xf32>
    %226 = arith.index_cast %arg1 : i32 to index
    %c52 = arith.constant 52 : index
    %227 = memref.load %arg2[%226, %c52] : memref<3x80xf32, #tpu.memory_space<smem>>
    %228 = vector.broadcast %227 : f32 to vector<16x128xf32>
    %229 = arith.mulf %215, %228 : vector<16x128xf32>
    %230 = arith.addf %195, %229 : vector<16x128xf32>
    %231 = arith.index_cast %arg1 : i32 to index
    %c53 = arith.constant 53 : index
    %232 = memref.load %arg2[%231, %c53] : memref<3x80xf32, #tpu.memory_space<smem>>
    %233 = vector.broadcast %232 : f32 to vector<16x128xf32>
    %234 = arith.mulf %215, %233 : vector<16x128xf32>
    %235 = arith.addf %200, %234 : vector<16x128xf32>
    %236 = arith.index_cast %arg1 : i32 to index
    %c54 = arith.constant 54 : index
    %237 = memref.load %arg2[%236, %c54] : memref<3x80xf32, #tpu.memory_space<smem>>
    %238 = vector.broadcast %237 : f32 to vector<16x128xf32>
    %239 = arith.mulf %215, %238 : vector<16x128xf32>
    %240 = arith.addf %205, %239 : vector<16x128xf32>
    %241 = arith.index_cast %arg1 : i32 to index
    %c7 = arith.constant 7 : index
    %242 = memref.load %arg2[%241, %c7] : memref<3x80xf32, #tpu.memory_space<smem>>
    %243 = vector.broadcast %242 : f32 to vector<16x128xf32>
    %244 = arith.mulf %0, %243 : vector<16x128xf32>
    %245 = arith.index_cast %arg1 : i32 to index
    %c17 = arith.constant 17 : index
    %246 = memref.load %arg2[%245, %c17] : memref<3x80xf32, #tpu.memory_space<smem>>
    %247 = vector.broadcast %246 : f32 to vector<16x128xf32>
    %248 = arith.addf %244, %247 : vector<16x128xf32>
    %cst_8 = arith.constant 0.000000e+00 : f32
    %249 = vector.broadcast %cst_8 : f32 to vector<16x128xf32>
    %250 = arith.maximumf %248, %249 : vector<16x128xf32>
    %251 = arith.index_cast %arg1 : i32 to index
    %c55 = arith.constant 55 : index
    %252 = memref.load %arg2[%251, %c55] : memref<3x80xf32, #tpu.memory_space<smem>>
    %253 = vector.broadcast %252 : f32 to vector<16x128xf32>
    %254 = arith.mulf %250, %253 : vector<16x128xf32>
    %255 = arith.addf %220, %254 : vector<16x128xf32>
    %256 = arith.index_cast %arg1 : i32 to index
    %c56 = arith.constant 56 : index
    %257 = memref.load %arg2[%256, %c56] : memref<3x80xf32, #tpu.memory_space<smem>>
    %258 = vector.broadcast %257 : f32 to vector<16x128xf32>
    %259 = arith.mulf %250, %258 : vector<16x128xf32>
    %260 = arith.addf %225, %259 : vector<16x128xf32>
    %261 = arith.index_cast %arg1 : i32 to index
    %c57 = arith.constant 57 : index
    %262 = memref.load %arg2[%261, %c57] : memref<3x80xf32, #tpu.memory_space<smem>>
    %263 = vector.broadcast %262 : f32 to vector<16x128xf32>
    %264 = arith.mulf %250, %263 : vector<16x128xf32>
    %265 = arith.addf %230, %264 : vector<16x128xf32>
    %266 = arith.index_cast %arg1 : i32 to index
    %c58 = arith.constant 58 : index
    %267 = memref.load %arg2[%266, %c58] : memref<3x80xf32, #tpu.memory_space<smem>>
    %268 = vector.broadcast %267 : f32 to vector<16x128xf32>
    %269 = arith.mulf %250, %268 : vector<16x128xf32>
    %270 = arith.addf %235, %269 : vector<16x128xf32>
    %271 = arith.index_cast %arg1 : i32 to index
    %c59 = arith.constant 59 : index
    %272 = memref.load %arg2[%271, %c59] : memref<3x80xf32, #tpu.memory_space<smem>>
    %273 = vector.broadcast %272 : f32 to vector<16x128xf32>
    %274 = arith.mulf %250, %273 : vector<16x128xf32>
    %275 = arith.addf %240, %274 : vector<16x128xf32>
    %276 = arith.index_cast %arg1 : i32 to index
    %c8 = arith.constant 8 : index
    %277 = memref.load %arg2[%276, %c8] : memref<3x80xf32, #tpu.memory_space<smem>>
    %278 = vector.broadcast %277 : f32 to vector<16x128xf32>
    %279 = arith.mulf %0, %278 : vector<16x128xf32>
    %280 = arith.index_cast %arg1 : i32 to index
    %c18 = arith.constant 18 : index
    %281 = memref.load %arg2[%280, %c18] : memref<3x80xf32, #tpu.memory_space<smem>>
    %282 = vector.broadcast %281 : f32 to vector<16x128xf32>
    %283 = arith.addf %279, %282 : vector<16x128xf32>
    %cst_9 = arith.constant 0.000000e+00 : f32
    %284 = vector.broadcast %cst_9 : f32 to vector<16x128xf32>
    %285 = arith.maximumf %283, %284 : vector<16x128xf32>
    %286 = arith.index_cast %arg1 : i32 to index
    %c60 = arith.constant 60 : index
    %287 = memref.load %arg2[%286, %c60] : memref<3x80xf32, #tpu.memory_space<smem>>
    %288 = vector.broadcast %287 : f32 to vector<16x128xf32>
    %289 = arith.mulf %285, %288 : vector<16x128xf32>
    %290 = arith.addf %255, %289 : vector<16x128xf32>
    %291 = arith.index_cast %arg1 : i32 to index
    %c61 = arith.constant 61 : index
    %292 = memref.load %arg2[%291, %c61] : memref<3x80xf32, #tpu.memory_space<smem>>
    %293 = vector.broadcast %292 : f32 to vector<16x128xf32>
    %294 = arith.mulf %285, %293 : vector<16x128xf32>
    %295 = arith.addf %260, %294 : vector<16x128xf32>
    %296 = arith.index_cast %arg1 : i32 to index
    %c62 = arith.constant 62 : index
    %297 = memref.load %arg2[%296, %c62] : memref<3x80xf32, #tpu.memory_space<smem>>
    %298 = vector.broadcast %297 : f32 to vector<16x128xf32>
    %299 = arith.mulf %285, %298 : vector<16x128xf32>
    %300 = arith.addf %265, %299 : vector<16x128xf32>
    %301 = arith.index_cast %arg1 : i32 to index
    %c63 = arith.constant 63 : index
    %302 = memref.load %arg2[%301, %c63] : memref<3x80xf32, #tpu.memory_space<smem>>
    %303 = vector.broadcast %302 : f32 to vector<16x128xf32>
    %304 = arith.mulf %285, %303 : vector<16x128xf32>
    %305 = arith.addf %270, %304 : vector<16x128xf32>
    %306 = arith.index_cast %arg1 : i32 to index
    %c64 = arith.constant 64 : index
    %307 = memref.load %arg2[%306, %c64] : memref<3x80xf32, #tpu.memory_space<smem>>
    %308 = vector.broadcast %307 : f32 to vector<16x128xf32>
    %309 = arith.mulf %285, %308 : vector<16x128xf32>
    %310 = arith.addf %275, %309 : vector<16x128xf32>
    %311 = arith.index_cast %arg1 : i32 to index
    %c9 = arith.constant 9 : index
    %312 = memref.load %arg2[%311, %c9] : memref<3x80xf32, #tpu.memory_space<smem>>
    %313 = vector.broadcast %312 : f32 to vector<16x128xf32>
    %314 = arith.mulf %0, %313 : vector<16x128xf32>
    %315 = arith.index_cast %arg1 : i32 to index
    %c19 = arith.constant 19 : index
    %316 = memref.load %arg2[%315, %c19] : memref<3x80xf32, #tpu.memory_space<smem>>
    %317 = vector.broadcast %316 : f32 to vector<16x128xf32>
    %318 = arith.addf %314, %317 : vector<16x128xf32>
    %cst_10 = arith.constant 0.000000e+00 : f32
    %319 = vector.broadcast %cst_10 : f32 to vector<16x128xf32>
    %320 = arith.maximumf %318, %319 : vector<16x128xf32>
    %321 = arith.index_cast %arg1 : i32 to index
    %c65 = arith.constant 65 : index
    %322 = memref.load %arg2[%321, %c65] : memref<3x80xf32, #tpu.memory_space<smem>>
    %323 = vector.broadcast %322 : f32 to vector<16x128xf32>
    %324 = arith.mulf %320, %323 : vector<16x128xf32>
    %325 = arith.addf %290, %324 : vector<16x128xf32>
    %326 = arith.index_cast %arg1 : i32 to index
    %c66 = arith.constant 66 : index
    %327 = memref.load %arg2[%326, %c66] : memref<3x80xf32, #tpu.memory_space<smem>>
    %328 = vector.broadcast %327 : f32 to vector<16x128xf32>
    %329 = arith.mulf %320, %328 : vector<16x128xf32>
    %330 = arith.addf %295, %329 : vector<16x128xf32>
    %331 = arith.index_cast %arg1 : i32 to index
    %c67 = arith.constant 67 : index
    %332 = memref.load %arg2[%331, %c67] : memref<3x80xf32, #tpu.memory_space<smem>>
    %333 = vector.broadcast %332 : f32 to vector<16x128xf32>
    %334 = arith.mulf %320, %333 : vector<16x128xf32>
    %335 = arith.addf %300, %334 : vector<16x128xf32>
    %336 = arith.index_cast %arg1 : i32 to index
    %c68 = arith.constant 68 : index
    %337 = memref.load %arg2[%336, %c68] : memref<3x80xf32, #tpu.memory_space<smem>>
    %338 = vector.broadcast %337 : f32 to vector<16x128xf32>
    %339 = arith.mulf %320, %338 : vector<16x128xf32>
    %340 = arith.addf %305, %339 : vector<16x128xf32>
    %341 = arith.index_cast %arg1 : i32 to index
    %c69 = arith.constant 69 : index
    %342 = memref.load %arg2[%341, %c69] : memref<3x80xf32, #tpu.memory_space<smem>>
    %343 = vector.broadcast %342 : f32 to vector<16x128xf32>
    %344 = arith.mulf %320, %343 : vector<16x128xf32>
    %345 = arith.addf %310, %344 : vector<16x128xf32>
    %346 = arith.index_cast %arg1 : i32 to index
    %c70 = arith.constant 70 : index
    %347 = memref.load %arg2[%346, %c70] : memref<3x80xf32, #tpu.memory_space<smem>>
    %348 = vector.broadcast %347 : f32 to vector<16x128xf32>
    %349 = arith.addf %325, %348 : vector<16x128xf32>
    %cst_11 = arith.constant 0.000000e+00 : f32
    %350 = vector.broadcast %cst_11 : f32 to vector<16x128xf32>
    %351 = arith.maximumf %349, %350 : vector<16x128xf32>
    %352 = arith.index_cast %arg1 : i32 to index
    %c75 = arith.constant 75 : index
    %353 = memref.load %arg2[%352, %c75] : memref<3x80xf32, #tpu.memory_space<smem>>
    %354 = vector.broadcast %353 : f32 to vector<16x128xf32>
    %355 = arith.mulf %351, %354 : vector<16x128xf32>
    %356 = arith.index_cast %arg1 : i32 to index
    %c71 = arith.constant 71 : index
    %357 = memref.load %arg2[%356, %c71] : memref<3x80xf32, #tpu.memory_space<smem>>
    %358 = vector.broadcast %357 : f32 to vector<16x128xf32>
    %359 = arith.addf %330, %358 : vector<16x128xf32>
    %cst_12 = arith.constant 0.000000e+00 : f32
    %360 = vector.broadcast %cst_12 : f32 to vector<16x128xf32>
    %361 = arith.maximumf %359, %360 : vector<16x128xf32>
    %362 = arith.index_cast %arg1 : i32 to index
    %c76 = arith.constant 76 : index
    %363 = memref.load %arg2[%362, %c76] : memref<3x80xf32, #tpu.memory_space<smem>>
    %364 = vector.broadcast %363 : f32 to vector<16x128xf32>
    %365 = arith.mulf %361, %364 : vector<16x128xf32>
    %366 = arith.addf %355, %365 : vector<16x128xf32>
    %367 = arith.index_cast %arg1 : i32 to index
    %c72 = arith.constant 72 : index
    %368 = memref.load %arg2[%367, %c72] : memref<3x80xf32, #tpu.memory_space<smem>>
    %369 = vector.broadcast %368 : f32 to vector<16x128xf32>
    %370 = arith.addf %335, %369 : vector<16x128xf32>
    %cst_13 = arith.constant 0.000000e+00 : f32
    %371 = vector.broadcast %cst_13 : f32 to vector<16x128xf32>
    %372 = arith.maximumf %370, %371 : vector<16x128xf32>
    %373 = arith.index_cast %arg1 : i32 to index
    %c77 = arith.constant 77 : index
    %374 = memref.load %arg2[%373, %c77] : memref<3x80xf32, #tpu.memory_space<smem>>
    %375 = vector.broadcast %374 : f32 to vector<16x128xf32>
    %376 = arith.mulf %372, %375 : vector<16x128xf32>
    %377 = arith.addf %366, %376 : vector<16x128xf32>
    %378 = arith.index_cast %arg1 : i32 to index
    %c73 = arith.constant 73 : index
    %379 = memref.load %arg2[%378, %c73] : memref<3x80xf32, #tpu.memory_space<smem>>
    %380 = vector.broadcast %379 : f32 to vector<16x128xf32>
    %381 = arith.addf %340, %380 : vector<16x128xf32>
    %cst_14 = arith.constant 0.000000e+00 : f32
    %382 = vector.broadcast %cst_14 : f32 to vector<16x128xf32>
    %383 = arith.maximumf %381, %382 : vector<16x128xf32>
    %384 = arith.index_cast %arg1 : i32 to index
    %c78 = arith.constant 78 : index
    %385 = memref.load %arg2[%384, %c78] : memref<3x80xf32, #tpu.memory_space<smem>>
    %386 = vector.broadcast %385 : f32 to vector<16x128xf32>
    %387 = arith.mulf %383, %386 : vector<16x128xf32>
    %388 = arith.addf %377, %387 : vector<16x128xf32>
    %389 = arith.index_cast %arg1 : i32 to index
    %c74 = arith.constant 74 : index
    %390 = memref.load %arg2[%389, %c74] : memref<3x80xf32, #tpu.memory_space<smem>>
    %391 = vector.broadcast %390 : f32 to vector<16x128xf32>
    %392 = arith.addf %345, %391 : vector<16x128xf32>
    %cst_15 = arith.constant 0.000000e+00 : f32
    %393 = vector.broadcast %cst_15 : f32 to vector<16x128xf32>
    %394 = arith.maximumf %392, %393 : vector<16x128xf32>
    %395 = arith.index_cast %arg1 : i32 to index
    %c79 = arith.constant 79 : index
    %396 = memref.load %arg2[%395, %c79] : memref<3x80xf32, #tpu.memory_space<smem>>
    %397 = vector.broadcast %396 : f32 to vector<16x128xf32>
    %398 = arith.mulf %394, %397 : vector<16x128xf32>
    %399 = arith.addf %388, %398 : vector<16x128xf32>
    %c0_16 = arith.constant 0 : index
    %c0_17 = arith.constant 0 : index
    %c0_18 = arith.constant 0 : index
    %400 = vector.load %arg4[%c0_16, %c0_17, %c0_18] : memref<1x16x128xf32, #tpu.memory_space<vmem>>, vector<1x16x128xf32>
    %401 = vector.shape_cast %400 : vector<1x16x128xf32> to vector<16x128xf32>
    %402 = vector.shape_cast %399 : vector<16x128xf32> to vector<1x16x128xf32>
    tpu.vector_store %arg4[%c0_16, %c0_17, %c0_18], %402 {strides = array<i32>} : memref<1x16x128xf32, #tpu.memory_space<vmem>>, vector<1x16x128xf32>,
    return
  }
  func.func @transform_0(%arg0: i32, %arg1: i32) -> (i32, i32) {
    %c0_i32 = arith.constant 0 : i32
    %c0_i32_0 = arith.constant 0 : i32
    %c0_i32_1 = arith.constant 0 : i32
    return %c0_i32, %c0_i32_0 : i32, i32
  }
  func.func @transform_1(%arg0: i32, %arg1: i32) -> (i32, i32) {
    %c0_i32 = arith.constant 0 : i32
    %c0_i32_0 = arith.constant 0 : i32
    return %arg0, %c0_i32 : i32, i32
  }
  func.func @transform_2(%arg0: i32, %arg1: i32) -> (i32, i32, i32) {
    %c0_i32 = arith.constant 0 : i32
    %c0_i32_0 = arith.constant 0 : i32
    return %arg1, %arg0, %c0_i32 : i32, i32, i32
  }
}

</mosaic_0001>

<llo_original>
// kernel: tpu_custom_call.1
$region0: #{tpu_custom_call.1}
  #allocation0 [shape = 'u32[]', space=smem, size = 0x4, offset = 0x4, fixed_abs, tag = 'smem constant byte address 0x4 - core index']
  #allocation1 [shape = 'u32[144,128]{1,0:T(1,128)}', space=vmem, size = 0x12000, scoped, tag = 'internal scratch']
  %s0 = inlined_call_operand.hbm [shape: f32[3,80], index: 0, kind: input, shape index: {}]
  %s1 = inlined_call_operand.hbm [shape: f32[48,128], index: 1, kind: input, shape index: {}]
  %s2 = inlined_call_operand.hbm [shape: f32[3,48,128], index: 2, kind: output, shape index: {}]
  %s3 = sld [smem:[#allocation0]]
  $region49: #{tpu_custom_call.1} parent=0
    _
  %s5 = ssub.s32 1, %s3
  %s6 = scalar_select 0, %s5, %s3
  $region1: #{tpu_custom_call.1} parent=0
    #allocation2 [shape = 'u8[2048]{0}', space=smem, size = 0x800, scoped, tag = 'input window, operand 0, single buffered']
    #allocation3 [shape = 's32[2]{0}', space=sflag, size = 0x8, scoped, tag = 'scoped memory for tpu_custom_call.1']
    #allocation4 [shape = 's32[2]{0}', space=sflag, size = 0x8, scoped, tag = 'scoped memory for tpu_custom_call.1']
    #allocation5 [shape = 's32[2]{0}', space=sflag, size = 0x8, scoped, tag = 'scoped memory for tpu_custom_call.1']
    #allocation6 [shape = 'u8[16384]{0}', space=vmem, size = 0x4000, scoped, tag = 'input window, operand 1']
    #allocation7 [shape = 'u8[16384]{0}', space=vmem, size = 0x4000, scoped, tag = 'output window, operand 0']
    %7 = vsyncpa [#allocation5], 0
    %8 = vsyncpa [#allocation3], 0
    %s9 = scalar_lea.sflag [#allocation3], 1
    %10 = vsyncpa %s9, 0
    %11 = vsyncpa [#allocation4], 0
    %s12 = scalar_lea.sflag [#allocation4], 1
    %13 = vsyncpa %s12, 0
    loop: start=0, step=1, limit=11
    $region2: #{tpu_custom_call.1} parent=1 // loop_pre_header
      _
    $region3: #{tpu_custom_call.1} parent=1 // loop_header
      %s15 = sphi 0, %s19
      %p16 = scmp.ge.s32.totalorder %s15, 11
      %s22 = sphi 0, %s34
      %s23 = sphi 0, %s30
      %s24 = sphi 0, %s22
      %s25 = sphi 0, %s23
      %s26 = sphi 0, %s24
      %s27 = sphi 0, %s25
      %s35 = sphi 0, %s35
      %s37 = sphi 0, %s35
      %s38 = sphi 0, %s37
      %s52 = sphi 0, %s38
      %s58 = sphi 0, %s60
      %s61 = sphi 0, %s58
      %s62 = sphi 0, %s61
      %s78 = sphi 0, %s62
      %s86 = sphi 0, %s88
      %s89 = sphi 0, %s86
      %s90 = sphi 0, %s89
      %s106 = sphi 0, %s90
    $region4: #{tpu_custom_call.1} parent=1 // loop_header_branch
      %18 = sbr.rel (%p16) target = $region8
    $region5: #{tpu_custom_call.1} parent=1 // loop_body
      %s20 = ssub.s32 %s15, 1
      %s21 = ssub.s32 %s15, 2
      %s28 = sadd.s32 1, %s23
      %p29 = scmp.ge.s32.totalorder %s28, 3
      %s30 = scalar_select %p29, 0, %s28
      %s31 = sadd.s32 1, %s22
      %s32 = scalar_select %p29, %s31, %s22
      %p33 = scmp.ge.s32.totalorder %s32, 3
      %s34 = scalar_select %p33, 0, %s32
      %s36 = sadd.s32 %s35, 1
      %p39 = scmp.eq.s32.totalorder %s15, 8
      %p40 = scmp.ne.s32.totalorder %s35, %s37
      %p41 = scmp.eq.s32.totalorder %s15, 0
      %p42 = por %p40, %p41
      %p43 = scmp.ne.s32.totalorder %s35, %s37
      %p44 = scmp.eq.s32.totalorder %s20, 8
      %p45 = por %p43, %p44
      %p46 = scmp.ne.s32.totalorder %s37, %s38
      %p47 = scmp.eq.s32.totalorder %s20, 0
      %p48 = por %p46, %p47
      %p49 = scmp.ne.s32.totalorder %s37, %s38
      %p50 = scmp.eq.s32.totalorder %s21, 8
      %p51 = por %p49, %p50
      %p53 = scmp.ne.s32.totalorder %s38, %s52
      %p54 = scmp.eq.s32.totalorder %s21, 0
      %p55 = por %p53, %p54
      %s56 = ssub.s32 %s22, %s34
      %p57 = scmp.eq.s32.totalorder %s56, 0
      %s59 = sadd.s32 %s58, 1
      %s60 = scalar_select %p57, %s58, %s59
      %p63 = pneg %p57
      %p64 = scmp.eq.s32.totalorder %s15, 8
      %p65 = por %p63, %p64
      %p66 = scmp.ne.s32.totalorder %s58, %s61
      %p67 = scmp.eq.s32.totalorder %s15, 0
      %p68 = por %p66, %p67
      %p69 = scmp.ne.s32.totalorder %s58, %s61
      %p70 = scmp.eq.s32.totalorder %s20, 8
      %p71 = por %p69, %p70
      %p72 = scmp.ne.s32.totalorder %s61, %s62
      %p73 = scmp.eq.s32.totalorder %s20, 0
      %p74 = por %p72, %p73
      %p75 = scmp.ne.s32.totalorder %s61, %s62
      %p76 = scmp.eq.s32.totalorder %s21, 8
      %p77 = por %p75, %p76
      %p79 = scmp.ne.s32.totalorder %s62, %s78
      %p80 = scmp.eq.s32.totalorder %s21, 0
      %p81 = por %p79, %p80
      %s82 = ssub.s32 %s23, %s30
      %s83 = ssub.s32 %s22, %s34
      %s84 = sor.u32 %s82, %s83
      %p85 = scmp.eq.s32.totalorder %s84, 0
      %s87 = sadd.s32 %s86, 1
      %s88 = scalar_select %p85, %s86, %s87
      %p91 = pneg %p85
      %p92 = scmp.eq.s32.totalorder %s15, 8
      %p93 = por %p91, %p92
      %p94 = scmp.ne.s32.totalorder %s86, %s89
      %p95 = scmp.eq.s32.totalorder %s15, 0
      %p96 = por %p94, %p95
      %p97 = scmp.ne.s32.totalorder %s86, %s89
      %p98 = scmp.eq.s32.totalorder %s20, 8
      %p99 = por %p97, %p98
      %p100 = scmp.ne.s32.totalorder %s89, %s90
      %p101 = scmp.eq.s32.totalorder %s20, 0
      %p102 = por %p100, %p101
      %p103 = scmp.ne.s32.totalorder %s89, %s90
      %p104 = scmp.eq.s32.totalorder %s21, 8
      %p105 = por %p103, %p104
      %p107 = scmp.ne.s32.totalorder %s90, %s106
      %p108 = scmp.eq.s32.totalorder %s21, 0
      %p109 = por %p107, %p108
      %p110 = scmp.le.s32.totalorder 1, %s15
      %p111 = scmp.lt.s32.totalorder %s15, 10
      %p112 = pnand %p110, %p111
      %p113 = pneg %p112
      // Predicated region
      $region9: #{tpu_custom_call.1} parent=5 // pred_check
        _
      $region10: #{tpu_custom_call.1} parent=5 // pred_check_branch
        %115 = sbr.rel (%p112) target = $region12
      $region11: #{tpu_custom_call.1} parent=5 // pred_region
        %s116 = ssub.s32 %s15, 1
        // Predicated region
        $region13: #{tpu_custom_call.1} parent=11 // pred_check
          %p117 = pneg %p48
        $region14: #{tpu_custom_call.1} parent=11 // pred_check_branch
          %119 = sbr.rel (%p117) target = $region16
        $region15: #{tpu_custom_call.1} parent=11 // pred_region
          %s121 = ssub.s32 64, 64
          %122 = vsyncadd [#allocation5], %s121
          %125 = dma.hbm_to_smem %s0, 64, [#allocation2], [#allocation5]
        $region16: #{tpu_custom_call.1} parent=11 // pred_fallthru
          _
      $region12: #{tpu_custom_call.1} parent=5 // pred_fallthru
        _
      %p126 = scmp.lt.s32.totalorder %s15, 9
      // Predicated region
      $region17: #{tpu_custom_call.1} parent=5 // pred_check
        %p127 = pneg %p126
      $region18: #{tpu_custom_call.1} parent=5 // pred_check_branch
        %129 = sbr.rel (%p127) target = $region20
      $region19: #{tpu_custom_call.1} parent=5 // pred_region
        // Predicated region
        $region21: #{tpu_custom_call.1} parent=19 // pred_check
          %p130 = pneg %p68
        $region22: #{tpu_custom_call.1} parent=19 // pred_check_branch
          %132 = sbr.rel (%p130) target = $region24
        $region23: #{tpu_custom_call.1} parent=19 // pred_region
          %s133 = sand.u32 %s58, 1
          %s134 = scalar_lea.sflag [#allocation3], %s133
          %s135 = sand.u32 %s58, 1
          %s136 = smul.addr %s135, 16
          %s137 = scalar_lea.vmem [#allocation6], %s136
          %s138 = smul.u32 2, %s22
          %s140 = ssub.s32 256, 256
          %141 = vsyncadd %s134, %s140
          %s142 = smul.addr %s138, 128
          %s143 = scalar_lea.hbm %s1, %s142
          %s144 = sshll.u32 %s137, 4
          %s145 = int_to_ptr.vmem [resolvable:$true] %s144
          %150 = dma.hbm_to_vmem [thread:$0]  %s143, 256, %s145, %s134, 128, 128, 8
        $region24: #{tpu_custom_call.1} parent=19 // pred_fallthru
          _
      $region20: #{tpu_custom_call.1} parent=5 // pred_fallthru
        _
      %p151 = scmp.le.s32.totalorder 1, %s15
      %p152 = scmp.lt.s32.totalorder %s15, 10
      %p153 = pnand %p151, %p152
      %p154 = pneg %p153
      // Predicated region
      $region25: #{tpu_custom_call.1} parent=5 // pred_check
        _
      $region26: #{tpu_custom_call.1} parent=5 // pred_check_branch
        %156 = sbr.rel (%p153) target = $region28
      $region27: #{tpu_custom_call.1} parent=5 // pred_region
        %s157 = ssub.s32 %s15, 1
        // Predicated region
        $region29: #{tpu_custom_call.1} parent=27 // pred_check
          %p158 = pneg %p48
        $region30: #{tpu_custom_call.1} parent=27 // pred_check_branch
          %160 = sbr.rel (%p158) target = $region32
        $region31: #{tpu_custom_call.1} parent=27 // pred_region
          %161 = dma.done [#allocation5], 64
        $region32: #{tpu_custom_call.1} parent=27 // pred_fallthru
          _
        %s162 = sand.u32 %s61, 1
        %s163 = scalar_lea.sflag [#allocation3], %s162
        %s164 = sand.u32 %s61, 1
        %s165 = smul.addr %s164, 16
        %s166 = scalar_lea.vmem [#allocation6], %s165
        // Predicated region
        $region33: #{tpu_custom_call.1} parent=27 // pred_check
          %p167 = pneg %p74
        $region34: #{tpu_custom_call.1} parent=27 // pred_check_branch
          %169 = sbr.rel (%p167) target = $region36
        $region35: #{tpu_custom_call.1} parent=27 // pred_region
          %170 = dma.done %s163, 256
        $region36: #{tpu_custom_call.1} parent=27 // pred_fallthru
          _
        %171 = sfence
        %p172 = pneg %p48
        %p173 = pneg %p45
        %s174 = sand.u32 %s61, 1
        %s175 = scalar_lea.sflag [#allocation3], %s174
        %s176 = sand.u32 %s61, 1
        %s177 = smul.addr %s176, 16
        %s178 = scalar_lea.vmem [#allocation6], %s177
        %p179 = pneg %p74
        %p180 = pneg %p71
        %p181 = pneg %p102
        %p182 = pneg %p99
        %s183 = sand.u32 %s89, 1
        %s184 = scalar_lea.sflag [#allocation4], %s183
        %s185 = sand.u32 %s89, 1
        %s186 = smul.addr %s185, 16
        %s187 = scalar_lea.vmem [#allocation7], %s186
        %s188 = smul.u32 2, %s24
        %s189 = smul.u32 2, %s24
        %v190 = vld [vmem:[%s166] sm:$0xff]
        %v191 = vld [vmem:[%s166 + $0x8] sm:$0xff]
        %s192 = smul.u32 %s25, 128
        %s193 = sld [smem:[#allocation2 + %s192]]
        %v194 = vstv %s193
        %v195 = vmul.f32 %v190, %v194
        %v196 = vmul.f32 %v191, %v194
        %s197 = sadd.s32 %s192, 10
        %s198 = sld [smem:[#allocation2 + %s197]]
        %v199 = vstv %s198
        %v200 = vadd.f32 %v195, %v199
        %v201 = vadd.f32 %v196, %v199
        %v202 = vmax.f32 %v200, 0.0
        %v203 = vmax.f32 %v201, 0.0
        %s204 = sadd.s32 %s192, 20
        %s205 = sld [smem:[#allocation2 + %s204]]
        %v206 = vstv %s205
        %v207 = vmul.f32 %v202, %v206
        %v208 = vmul.f32 %v203, %v206
        %s209 = sadd.s32 %s192, 21
        %s210 = sld [smem:[#allocation2 + %s209]]
        %v211 = vstv %s210
        %v212 = vmul.f32 %v202, %v211
        %v213 = vmul.f32 %v203, %v211
        %s214 = sadd.s32 %s192, 22
        %s215 = sld [smem:[#allocation2 + %s214]]
        %v216 = vstv %s215
        %v217 = vmul.f32 %v202, %v216
        %v218 = vmul.f32 %v203, %v216
        %s219 = sadd.s32 %s192, 23
        %s220 = sld [smem:[#allocation2 + %s219]]
        %v221 = vstv %s220
        %v222 = vmul.f32 %v202, %v221
        %v223 = vmul.f32 %v203, %v221
        %s224 = sadd.s32 %s192, 24
        %s225 = sld [smem:[#allocation2 + %s224]]
        %v226 = vstv %s225
        %v227 = vmul.f32 %v202, %v226
        %v228 = vmul.f32 %v203, %v226
        %s229 = sadd.s32 %s192, 1
        %s230 = sld [smem:[#allocation2 + %s229]]
        %v231 = vstv %s230
        %v232 = vmul.f32 %v190, %v231
        %v233 = vmul.f32 %v191, %v231
        %s234 = sadd.s32 %s192, 11
        %s235 = sld [smem:[#allocation2 + %s234]]
        %v236 = vstv %s235
        %v237 = vadd.f32 %v232, %v236
        %v238 = vadd.f32 %v233, %v236
        %v239 = vmax.f32 %v237, 0.0
        %v240 = vmax.f32 %v238, 0.0
        %s241 = sadd.s32 %s192, 25
        %s242 = sld [smem:[#allocation2 + %s241]]
        %v243 = vstv %s242
        %v244 = vmul.f32 %v239, %v243
        %v245 = vmul.f32 %v240, %v243
        %v246 = vadd.f32 %v207, %v244
        %v247 = vadd.f32 %v208, %v245
        %s248 = sadd.s32 %s192, 26
        %s249 = sld [smem:[#allocation2 + %s248]]
        %v250 = vstv %s249
        %v251 = vmul.f32 %v239, %v250
        %v252 = vmul.f32 %v240, %v250
        %v253 = vadd.f32 %v212, %v251
        %v254 = vadd.f32 %v213, %v252
        %s255 = sadd.s32 %s192, 27
        %s256 = sld [smem:[#allocation2 + %s255]]
        %v257 = vstv %s256
        %v258 = vmul.f32 %v239, %v257
        %v259 = vmul.f32 %v240, %v257
        %v260 = vadd.f32 %v217, %v258
        %v261 = vadd.f32 %v218, %v259
        %s262 = sadd.s32 %s192, 28
        %s263 = sld [smem:[#allocation2 + %s262]]
        %v264 = vstv %s263
        %v265 = vmul.f32 %v239, %v264
        %v266 = vmul.f32 %v240, %v264
        %v267 = vadd.f32 %v222, %v265
        %v268 = vadd.f32 %v223, %v266
        %s269 = sadd.s32 %s192, 29
        %s270 = sld [smem:[#allocation2 + %s269]]
        %v271 = vstv %s270
        %v272 = vmul.f32 %v239, %v271
        %v273 = vmul.f32 %v240, %v271
        %v274 = vadd.f32 %v227, %v272
        %v275 = vadd.f32 %v228, %v273
        %s276 = sadd.s32 %s192, 2
        %s277 = sld [smem:[#allocation2 + %s276]]
        %v278 = vstv %s277
        %v279 = vmul.f32 %v190, %v278
        %v280 = vmul.f32 %v191, %v278
        %s281 = sadd.s32 %s192, 12
        %s282 = sld [smem:[#allocation2 + %s281]]
        %v283 = vstv %s282
        %v284 = vadd.f32 %v279, %v283
        %v285 = vadd.f32 %v280, %v283
        %v286 = vmax.f32 %v284, 0.0
        %v287 = vmax.f32 %v285, 0.0
        %s288 = sadd.s32 %s192, 30
        %s289 = sld [smem:[#allocation2 + %s288]]
        %v290 = vstv %s289
        %v291 = vmul.f32 %v286, %v290
        %v292 = vmul.f32 %v287, %v290
        %v293 = vadd.f32 %v246, %v291
        %v294 = vadd.f32 %v247, %v292
        %s295 = sadd.s32 %s192, 31
        %s296 = sld [smem:[#allocation2 + %s295]]
        %v297 = vstv %s296
        %v298 = vmul.f32 %v286, %v297
        %v299 = vmul.f32 %v287, %v297
        %v300 = vadd.f32 %v253, %v298
        %v301 = vadd.f32 %v254, %v299
        %s302 = sadd.s32 %s192, 32
        %s303 = sld [smem:[#allocation2 + %s302]]
        %v304 = vstv %s303
        %v305 = vmul.f32 %v286, %v304
        %v306 = vmul.f32 %v287, %v304
        %v307 = vadd.f32 %v260, %v305
        %v308 = vadd.f32 %v261, %v306
        %s309 = sadd.s32 %s192, 33
        %s310 = sld [smem:[#allocation2 + %s309]]
        %v311 = vstv %s310
        %v312 = vmul.f32 %v286, %v311
        %v313 = vmul.f32 %v287, %v311
        %v314 = vadd.f32 %v267, %v312
        %v315 = vadd.f32 %v268, %v313
        %s316 = sadd.s32 %s192, 34
        %s317 = sld [smem:[#allocation2 + %s316]]
        %v318 = vstv %s317
        %v319 = vmul.f32 %v286, %v318
        %v320 = vmul.f32 %v287, %v318
        %v321 = vadd.f32 %v274, %v319
        %v322 = vadd.f32 %v275, %v320
        %s323 = sadd.s32 %s192, 3
        %s324 = sld [smem:[#allocation2 + %s323]]
        %v325 = vstv %s324
        %v326 = vmul.f32 %v190, %v325
        %v327 = vmul.f32 %v191, %v325
        %s328 = sadd.s32 %s192, 13
        %s329 = sld [smem:[#allocation2 + %s328]]
        %v330 = vstv %s329
        %v331 = vadd.f32 %v326, %v330
        %v332 = vadd.f32 %v327, %v330
        %v333 = vmax.f32 %v331, 0.0
        %v334 = vmax.f32 %v332, 0.0
        %s335 = sadd.s32 %s192, 35
        %s336 = sld [smem:[#allocation2 + %s335]]
        %v337 = vstv %s336
        %v338 = vmul.f32 %v333, %v337
        %v339 = vmul.f32 %v334, %v337
        %v340 = vadd.f32 %v293, %v338
        %v341 = vadd.f32 %v294, %v339
        %s342 = sadd.s32 %s192, 36
        %s343 = sld [smem:[#allocation2 + %s342]]
        %v344 = vstv %s343
        %v345 = vmul.f32 %v333, %v344
        %v346 = vmul.f32 %v334, %v344
        %v347 = vadd.f32 %v300, %v345
        %v348 = vadd.f32 %v301, %v346
        %s349 = sadd.s32 %s192, 37
        %s350 = sld [smem:[#allocation2 + %s349]]
        %v351 = vstv %s350
        %v352 = vmul.f32 %v333, %v351
        %v353 = vmul.f32 %v334, %v351
        %v354 = vadd.f32 %v307, %v352
        %v355 = vadd.f32 %v308, %v353
        %s356 = sadd.s32 %s192, 38
        %s357 = sld [smem:[#allocation2 + %s356]]
        %v358 = vstv %s357
        %v359 = vmul.f32 %v333, %v358
        %v360 = vmul.f32 %v334, %v358
        %v361 = vadd.f32 %v314, %v359
        %v362 = vadd.f32 %v315, %v360
        %s363 = sadd.s32 %s192, 39
        %s364 = sld [smem:[#allocation2 + %s363]]
        %v365 = vstv %s364
        %v366 = vmul.f32 %v333, %v365
        %v367 = vmul.f32 %v334, %v365
        %v368 = vadd.f32 %v321, %v366
        %v369 = vadd.f32 %v322, %v367
        %s370 = sadd.s32 %s192, 4
        %s371 = sld [smem:[#allocation2 + %s370]]
        %v372 = vstv %s371
        %v373 = vmul.f32 %v190, %v372
        %v374 = vmul.f32 %v191, %v372
        %s375 = sadd.s32 %s192, 14
        %s376 = sld [smem:[#allocation2 + %s375]]
        %v377 = vstv %s376
        %v378 = vadd.f32 %v373, %v377
        %v379 = vadd.f32 %v374, %v377
        %v380 = vmax.f32 %v378, 0.0
        %v381 = vmax.f32 %v379, 0.0
        %s382 = sadd.s32 %s192, 40
        %s383 = sld [smem:[#allocation2 + %s382]]
        %v384 = vstv %s383
        %v385 = vmul.f32 %v380, %v384
        %v386 = vmul.f32 %v381, %v384
        %v387 = vadd.f32 %v340, %v385
        %v388 = vadd.f32 %v341, %v386
        %s389 = sadd.s32 %s192, 41
        %s390 = sld [smem:[#allocation2 + %s389]]
        %v391 = vstv %s390
        %v392 = vmul.f32 %v380, %v391
        %v393 = vmul.f32 %v381, %v391
        %v394 = vadd.f32 %v347, %v392
        %v395 = vadd.f32 %v348, %v393
        %s396 = sadd.s32 %s192, 42
        %s397 = sld [smem:[#allocation2 + %s396]]
        %v398 = vstv %s397
        %v399 = vmul.f32 %v380, %v398
        %v400 = vmul.f32 %v381, %v398
        %v401 = vadd.f32 %v354, %v399
        %v402 = vadd.f32 %v355, %v400
        %s403 = sadd.s32 %s192, 43
        %s404 = sld [smem:[#allocation2 + %s403]]
        %v405 = vstv %s404
        %v406 = vmul.f32 %v380, %v405
        %v407 = vmul.f32 %v381, %v405
        %v408 = vadd.f32 %v361, %v406
        %v409 = vadd.f32 %v362, %v407
        %s410 = sadd.s32 %s192, 44
        %s411 = sld [smem:[#allocation2 + %s410]]
        %v412 = vstv %s411
        %v413 = vmul.f32 %v380, %v412
        %v414 = vmul.f32 %v381, %v412
        %v415 = vadd.f32 %v368, %v413
        %v416 = vadd.f32 %v369, %v414
        %s417 = sadd.s32 %s192, 5
        %s418 = sld [smem:[#allocation2 + %s417]]
        %v419 = vstv %s418
        %v420 = vmul.f32 %v190, %v419
        %v421 = vmul.f32 %v191, %v419
        %s422 = sadd.s32 %s192, 15
        %s423 = sld [smem:[#allocation2 + %s422]]
        %v424 = vstv %s423
        %v425 = vadd.f32 %v420, %v424
        %v426 = vadd.f32 %v421, %v424
        %v427 = vmax.f32 %v425, 0.0
        %v428 = vmax.f32 %v426, 0.0
        %s429 = sadd.s32 %s192, 45
        %s430 = sld [smem:[#allocation2 + %s429]]
        %v431 = vstv %s430
        %v432 = vmul.f32 %v427, %v431
        %v433 = vmul.f32 %v428, %v431
        %v434 = vadd.f32 %v387, %v432
        %v435 = vadd.f32 %v388, %v433
        %s436 = sadd.s32 %s192, 46
        %s437 = sld [smem:[#allocation2 + %s436]]
        %v438 = vstv %s437
        %v439 = vmul.f32 %v427, %v438
        %v440 = vmul.f32 %v428, %v438
        %v441 = vadd.f32 %v394, %v439
        %v442 = vadd.f32 %v395, %v440
        %s443 = sadd.s32 %s192, 47
        %s444 = sld [smem:[#allocation2 + %s443]]
        %v445 = vstv %s444
        %v446 = vmul.f32 %v427, %v445
        %v447 = vmul.f32 %v428, %v445
        %v448 = vadd.f32 %v401, %v446
        %v449 = vadd.f32 %v402, %v447
        %s450 = sadd.s32 %s192, 48
        %s451 = sld [smem:[#allocation2 + %s450]]
        %v452 = vstv %s451
        %v453 = vmul.f32 %v427, %v452
        %v454 = vmul.f32 %v428, %v452
        %v455 = vadd.f32 %v408, %v453
        %v456 = vadd.f32 %v409, %v454
        %s457 = sadd.s32 %s192, 49
        %s458 = sld [smem:[#allocation2 + %s457]]
        %v459 = vstv %s458
        %v460 = vmul.f32 %v427, %v459
        %v461 = vmul.f32 %v428, %v459
        %v462 = vadd.f32 %v415, %v460
        %v463 = vadd.f32 %v416, %v461
        %s464 = sadd.s32 %s192, 6
        %s465 = sld [smem:[#allocation2 + %s464]]
        %v466 = vstv %s465
        %v467 = vmul.f32 %v190, %v466
        %v468 = vmul.f32 %v191, %v466
        %s469 = sadd.s32 %s192, 16
        %s470 = sld [smem:[#allocation2 + %s469]]
        %v471 = vstv %s470
        %v472 = vadd.f32 %v467, %v471
        %v473 = vadd.f32 %v468, %v471
        %v474 = vmax.f32 %v472, 0.0
        %v475 = vmax.f32 %v473, 0.0
        %s476 = sadd.s32 %s192, 50
        %s477 = sld [smem:[#allocation2 + %s476]]
        %v478 = vstv %s477
        %v479 = vmul.f32 %v474, %v478
        %v480 = vmul.f32 %v475, %v478
        %v481 = vadd.f32 %v434, %v479
        %v482 = vadd.f32 %v435, %v480
        %s483 = sadd.s32 %s192, 51
        %s484 = sld [smem:[#allocation2 + %s483]]
        %v485 = vstv %s484
        %v486 = vmul.f32 %v474, %v485
        %v487 = vmul.f32 %v475, %v485
        %v488 = vadd.f32 %v441, %v486
        %v489 = vadd.f32 %v442, %v487
        %s490 = sadd.s32 %s192, 52
        %s491 = sld [smem:[#allocation2 + %s490]]
        %v492 = vstv %s491
        %v493 = vmul.f32 %v474, %v492
        %v494 = vmul.f32 %v475, %v492
        %v495 = vadd.f32 %v448, %v493
        %v496 = vadd.f32 %v449, %v494
        %s497 = sadd.s32 %s192, 53
        %s498 = sld [smem:[#allocation2 + %s497]]
        %v499 = vstv %s498
        %v500 = vmul.f32 %v474, %v499
        %v501 = vmul.f32 %v475, %v499
        %v502 = vadd.f32 %v455, %v500
        %v503 = vadd.f32 %v456, %v501
        %s504 = sadd.s32 %s192, 54
        %s505 = sld [smem:[#allocation2 + %s504]]
        %v506 = vstv %s505
        %v507 = vmul.f32 %v474, %v506
        %v508 = vmul.f32 %v475, %v506
        %v509 = vadd.f32 %v462, %v507
        %v510 = vadd.f32 %v463, %v508
        %s511 = sadd.s32 %s192, 7
        %s512 = sld [smem:[#allocation2 + %s511]]
        %v513 = vstv %s512
        %v514 = vmul.f32 %v190, %v513
        %v515 = vmul.f32 %v191, %v513
        %s516 = sadd.s32 %s192, 17
        %s517 = sld [smem:[#allocation2 + %s516]]
        %v518 = vstv %s517
        %v519 = vadd.f32 %v514, %v518
        %v520 = vadd.f32 %v515, %v518
        %v521 = vmax.f32 %v519, 0.0
        %v522 = vmax.f32 %v520, 0.0
        %s523 = sadd.s32 %s192, 55
        %s524 = sld [smem:[#allocation2 + %s523]]
        %v525 = vstv %s524
        %v526 = vmul.f32 %v521, %v525
        %v527 = vmul.f32 %v522, %v525
        %v528 = vadd.f32 %v481, %v526
        %v529 = vadd.f32 %v482, %v527
        %s530 = sadd.s32 %s192, 56
        %s531 = sld [smem:[#allocation2 + %s530]]
        %v532 = vstv %s531
        %v533 = vmul.f32 %v521, %v532
        %v534 = vmul.f32 %v522, %v532
        %v535 = vadd.f32 %v488, %v533
        %v536 = vadd.f32 %v489, %v534
        %s537 = sadd.s32 %s192, 57
        %s538 = sld [smem:[#allocation2 + %s537]]
        %v539 = vstv %s538
        %v540 = vmul.f32 %v521, %v539
        %v541 = vmul.f32 %v522, %v539
        %v542 = vadd.f32 %v495, %v540
        %v543 = vadd.f32 %v496, %v541
        %s544 = sadd.s32 %s192, 58
        %s545 = sld [smem:[#allocation2 + %s544]]
        %v546 = vstv %s545
        %v547 = vmul.f32 %v521, %v546
        %v548 = vmul.f32 %v522, %v546
        %v549 = vadd.f32 %v502, %v547
        %v550 = vadd.f32 %v503, %v548
        %s551 = sadd.s32 %s192, 59
        %s552 = sld [smem:[#allocation2 + %s551]]
        %v553 = vstv %s552
        %v554 = vmul.f32 %v521, %v553
        %v555 = vmul.f32 %v522, %v553
        %v556 = vadd.f32 %v509, %v554
        %v557 = vadd.f32 %v510, %v555
        %s558 = sadd.s32 %s192, 8
        %s559 = sld [smem:[#allocation2 + %s558]]
        %v560 = vstv %s559
        %v561 = vmul.f32 %v190, %v560
        %v562 = vmul.f32 %v191, %v560
        %s563 = sadd.s32 %s192, 18
        %s564 = sld [smem:[#allocation2 + %s563]]
        %v565 = vstv %s564
        %v566 = vadd.f32 %v561, %v565
        %v567 = vadd.f32 %v562, %v565
        %v568 = vmax.f32 %v566, 0.0
        %v569 = vmax.f32 %v567, 0.0
        %s570 = sadd.s32 %s192, 60
        %s571 = sld [smem:[#allocation2 + %s570]]
        %v572 = vstv %s571
        %v573 = vmul.f32 %v568, %v572
        %v574 = vmul.f32 %v569, %v572
        %v575 = vadd.f32 %v528, %v573
        %v576 = vadd.f32 %v529, %v574
        %s577 = sadd.s32 %s192, 61
        %s578 = sld [smem:[#allocation2 + %s577]]
        %v579 = vstv %s578
        %v580 = vmul.f32 %v568, %v579
        %v581 = vmul.f32 %v569, %v579
        %v582 = vadd.f32 %v535, %v580
        %v583 = vadd.f32 %v536, %v581
        %s584 = sadd.s32 %s192, 62
        %s585 = sld [smem:[#allocation2 + %s584]]
        %v586 = vstv %s585
        %v587 = vmul.f32 %v568, %v586
        %v588 = vmul.f32 %v569, %v586
        %v589 = vadd.f32 %v542, %v587
        %v590 = vadd.f32 %v543, %v588
        %s591 = sadd.s32 %s192, 63
        %s592 = sld [smem:[#allocation2 + %s591]]
        %v593 = vstv %s592
        %v594 = vmul.f32 %v568, %v593
        %v595 = vmul.f32 %v569, %v593
        %v596 = vadd.f32 %v549, %v594
        %v597 = vadd.f32 %v550, %v595
        %s598 = sadd.s32 %s192, 64
        %s599 = sld [smem:[#allocation2 + %s598]]
        %v600 = vstv %s599
        %v601 = vmul.f32 %v568, %v600
        %v602 = vmul.f32 %v569, %v600
        %v603 = vadd.f32 %v556, %v601
        %v604 = vadd.f32 %v557, %v602
        %s605 = sadd.s32 %s192, 9
        %s606 = sld [smem:[#allocation2 + %s605]]
        %v607 = vstv %s606
        %v608 = vmul.f32 %v190, %v607
        %v609 = vmul.f32 %v191, %v607
        %s610 = sadd.s32 %s192, 19
        %s611 = sld [smem:[#allocation2 + %s610]]
        %v612 = vstv %s611
        %v613 = vadd.f32 %v608, %v612
        %v614 = vadd.f32 %v609, %v612
        %v615 = vmax.f32 %v613, 0.0
        %v616 = vmax.f32 %v614, 0.0
        %s617 = sadd.s32 %s192, 65
        %s618 = sld [smem:[#allocation2 + %s617]]
        %v619 = vstv %s618
        %v620 = vmul.f32 %v615, %v619
        %v621 = vmul.f32 %v616, %v619
        %v622 = vadd.f32 %v575, %v620
        %v623 = vadd.f32 %v576, %v621
        %s624 = sadd.s32 %s192, 66
        %s625 = sld [smem:[#allocation2 + %s624]]
        %v626 = vstv %s625
        %v627 = vmul.f32 %v615, %v626
        %v628 = vmul.f32 %v616, %v626
        %v629 = vadd.f32 %v582, %v627
        %v630 = vadd.f32 %v583, %v628
        %s631 = sadd.s32 %s192, 67
        %s632 = sld [smem:[#allocation2 + %s631]]
        %v633 = vstv %s632
        %v634 = vmul.f32 %v615, %v633
        %v635 = vmul.f32 %v616, %v633
        %v636 = vadd.f32 %v589, %v634
        %v637 = vadd.f32 %v590, %v635
        %s638 = sadd.s32 %s192, 68
        %s639 = sld [smem:[#allocation2 + %s638]]
        %v640 = vstv %s639
        %v641 = vmul.f32 %v615, %v640
        %v642 = vmul.f32 %v616, %v640
        %v643 = vadd.f32 %v596, %v641
        %v644 = vadd.f32 %v597, %v642
        %s645 = sadd.s32 %s192, 69
        %s646 = sld [smem:[#allocation2 + %s645]]
        %v647 = vstv %s646
        %v648 = vmul.f32 %v615, %v647
        %v649 = vmul.f32 %v616, %v647
        %v650 = vadd.f32 %v603, %v648
        %v651 = vadd.f32 %v604, %v649
        %s652 = sadd.s32 %s192, 70
        %s653 = sld [smem:[#allocation2 + %s652]]
        %v654 = vstv %s653
        %v655 = vadd.f32 %v622, %v654
        %v656 = vadd.f32 %v623, %v654
        %v657 = vmax.f32 %v655, 0.0
        %v658 = vmax.f32 %v656, 0.0
        %s659 = sadd.s32 %s192, 75
        %s660 = sld [smem:[#allocation2 + %s659]]
        %v661 = vstv %s660
        %v662 = vmul.f32 %v657, %v661
        %v663 = vmul.f32 %v658, %v661
        %s664 = sadd.s32 %s192, 71
        %s665 = sld [smem:[#allocation2 + %s664]]
        %v666 = vstv %s665
        %v667 = vadd.f32 %v629, %v666
        %v668 = vadd.f32 %v630, %v666
        %v669 = vmax.f32 %v667, 0.0
        %v670 = vmax.f32 %v668, 0.0
        %s671 = sadd.s32 %s192, 76
        %s672 = sld [smem:[#allocation2 + %s671]]
        %v673 = vstv %s672
        %v674 = vmul.f32 %v669, %v673
        %v675 = vmul.f32 %v670, %v673
        %v676 = vadd.f32 %v662, %v674
        %v677 = vadd.f32 %v663, %v675
        %s678 = sadd.s32 %s192, 72
        %s679 = sld [smem:[#allocation2 + %s678]]
        %v680 = vstv %s679
        %v681 = vadd.f32 %v636, %v680
        %v682 = vadd.f32 %v637, %v680
        %v683 = vmax.f32 %v681, 0.0
        %v684 = vmax.f32 %v682, 0.0
        %s685 = sadd.s32 %s192, 77
        %s686 = sld [smem:[#allocation2 + %s685]]
        %v687 = vstv %s686
        %v688 = vmul.f32 %v683, %v687
        %v689 = vmul.f32 %v684, %v687
        %v690 = vadd.f32 %v676, %v688
        %v691 = vadd.f32 %v677, %v689
        %s692 = sadd.s32 %s192, 73
        %s693 = sld [smem:[#allocation2 + %s692]]
        %v694 = vstv %s693
        %v695 = vadd.f32 %v643, %v694
        %v696 = vadd.f32 %v644, %v694
        %v697 = vmax.f32 %v695, 0.0
        %v698 = vmax.f32 %v696, 0.0
        %s699 = sadd.s32 %s192, 78
        %s700 = sld [smem:[#allocation2 + %s699]]
        %v701 = vstv %s700
        %v702 = vmul.f32 %v697, %v701
        %v703 = vmul.f32 %v698, %v701
        %v704 = vadd.f32 %v690, %v702
        %v705 = vadd.f32 %v691, %v703
        %s706 = sadd.s32 %s192, 74
        %s707 = sld [smem:[#allocation2 + %s706]]
        %v708 = vstv %s707
        %v709 = vadd.f32 %v650, %v708
        %v710 = vadd.f32 %v651, %v708
        %v711 = vmax.f32 %v709, 0.0
        %v712 = vmax.f32 %v710, 0.0
        %s713 = sadd.s32 %s192, 79
        %s714 = sld [smem:[#allocation2 + %s713]]
        %v715 = vstv %s714
        %v716 = vmul.f32 %v711, %v715
        %v717 = vmul.f32 %v712, %v715
        %v718 = vadd.f32 %v704, %v716
        %v719 = vadd.f32 %v705, %v717
        %720 = vst [vmem:[%s187] sm:$0xff] %v718
        %721 = vst [vmem:[%s187 + $0x8] sm:$0xff] %v719
        %s722 = sand.u32 %s89, 1
        %s723 = scalar_lea.sflag [#allocation4], %s722
        %s724 = sand.u32 %s89, 1
        %s725 = smul.addr %s724, 16
        %s726 = scalar_lea.vmem [#allocation7], %s725
        // Predicated region
        $region37: #{tpu_custom_call.1} parent=27 // pred_check
          %p727 = pneg %p99
        $region38: #{tpu_custom_call.1} parent=27 // pred_check_branch
          %729 = sbr.rel (%p727) target = $region40
        $region39: #{tpu_custom_call.1} parent=27 // pred_region
          %s730 = smul.u32 2, %s24
          %s732 = ssub.s32 256, 256
          %733 = vsyncadd %s723, %s732
          %s734 = smul.addr %s25, 6
          %s735 = sadd.s32 %s730, %s734
          %s736 = smul.addr %s735, 128
          %s737 = scalar_lea.hbm %s2, %s736
          %s738 = sshll.u32 %s726, 4
          %s739 = int_to_ptr.vmem [resolvable:$true] %s738
          %744 = dma.vmem_to_hbm [thread:$0]  %s739, 256, %s737, %s723, 128, 128, 8
        $region40: #{tpu_custom_call.1} parent=27 // pred_fallthru
          _
      $region28: #{tpu_custom_call.1} parent=5 // pred_fallthru
        _
      %p745 = scmp.le.s32.totalorder 2, %s15
      // Predicated region
      $region41: #{tpu_custom_call.1} parent=5 // pred_check
        %p746 = pneg %p745
      $region42: #{tpu_custom_call.1} parent=5 // pred_check_branch
        %748 = sbr.rel (%p746) target = $region44
      $region43: #{tpu_custom_call.1} parent=5 // pred_region
        %s749 = ssub.s32 %s15, 2
        // Predicated region
        $region45: #{tpu_custom_call.1} parent=43 // pred_check
          %p750 = pneg %p105
        $region46: #{tpu_custom_call.1} parent=43 // pred_check_branch
          %752 = sbr.rel (%p750) target = $region48
        $region47: #{tpu_custom_call.1} parent=43 // pred_region
          %s753 = sand.u32 %s90, 1
          %s754 = scalar_lea.sflag [#allocation4], %s753
          %s755 = sand.u32 %s90, 1
          %s756 = smul.addr %s755, 16
          %s757 = scalar_lea.vmem [#allocation7], %s756
          %758 = dma.done %s754, 256
        $region48: #{tpu_custom_call.1} parent=43 // pred_fallthru
          _
      $region44: #{tpu_custom_call.1} parent=5 // pred_fallthru
        _
    $region6: #{tpu_custom_call.1} parent=1 // loop_footer
      %s19 = sadd.s32 1, %s15
    $region7: #{tpu_custom_call.1} parent=1 // loop_footer_branch
      %14 = sbr.rel target = $region3
    $region8: #{tpu_custom_call.1} parent=1 // loop_exit
      _
    %759 = vsyncpa [#allocation3], 1
    %s760 = scalar_lea.sflag [#allocation3], 1
    %761 = vsyncpa %s760, 1
    %762 = vsyncpa [#allocation4], 1
    %s763 = scalar_lea.sflag [#allocation4], 1
    %764 = vsyncpa %s763, 1
    %765 = vsyncpa [#allocation5], 1
    %s766 = scalar_lea.sflag [#allocation5], 1
    %767 = vsyncpa %s766, 1

</llo_original>
